<compile_context>
chip_gen: v7x
topology: tpu7x:2x2x1
jax: 0.10.0
libtpu: 0.0.40
codegen_flags: <defaults>
</compile_context>

<pallas_src>
import functools

import jax
import jax.numpy as jnp
from jax.experimental import pallas as pl
from jax.experimental.pallas import tpu as pltpu


def _round_up(n, m):
    return ((n + m - 1) // m) * m


def _lstm_stack_kernel(x_ref, h_ref, c_ref, w_ref, h_out_ref, c_out_ref, xh_ref,
                       *, hidden_p, kx_p, num_layers):
    """Whole stacked-LSTM single timestep in one kernel invocation.

    Refs:
      x_ref:     (B, Kxp)            external input, zero-padded to Kxp lanes
      h_ref:     (L, B, Hp)          previous hidden states (padded cols == 0)
      c_ref:     (L, B, Hp)          previous cell states   (padded cols == 0)
      w_ref:     (L, Kxp+Hp, 4*Hp)   packed [W_ih^T ; W_hh^T] per layer, bf16,
                                     gate order i,f,g,o; padded rows/cols == 0
      h_out_ref: (L, B, Hp)          new hidden states
      c_out_ref: (L, B, Hp)          new cell states
      xh_ref:    (B, Kxp+Hp) f32     VMEM [layer input | h] slab fed to the MXU
    """
    Hp = hidden_p
    Kxp = kx_p

    def sigmoid(v):
        # sigmoid(x) == 0.5*(tanh(x/2)+1): one EUP push per element instead of
        # exp + divide.
        return 0.5 * (jnp.tanh(0.5 * v) + 1.0)

    # Layer-0 input occupies the leading Kxp lanes of the slab.  Padded columns
    # of x / h multiply zero weight rows, so no per-layer re-zeroing is needed.
    xh_ref[:, :Kxp] = x_ref[...]

    for l in range(num_layers):  # static unroll: L is small, gives LLO full visibility
        xh_ref[:, Kxp:] = h_ref[l]

        # Single MXU push per layer: [x|h] @ [W_ih^T ; W_hh^T] in bf16, f32 acc.
        gates = jnp.dot(xh_ref[...].astype(jnp.bfloat16), w_ref[l],
                        preferred_element_type=jnp.float32)      # (B, 4*Hp)

        i_g = sigmoid(gates[:, 0 * Hp:1 * Hp])
        f_g = sigmoid(gates[:, 1 * Hp:2 * Hp])
        g_g = jnp.tanh(gates[:, 2 * Hp:3 * Hp])
        o_g = sigmoid(gates[:, 3 * Hp:4 * Hp])

        c_new = f_g * c_ref[l] + i_g * g_g
        h_new = o_g * jnp.tanh(c_new)

        h_out_ref[l] = h_new.astype(h_out_ref.dtype)
        c_out_ref[l] = c_new.astype(c_out_ref.dtype)

        if l + 1 < num_layers:
            # Carry h_new forward as the next layer's input (stays in VMEM).
            # Lanes Hp..Kxp (if any) keep stale x data, but the matching weight
            # rows for layers > 0 are zero, so they contribute nothing.
            xh_ref[:, :Hp] = h_new


@jax.jit
def lstm_stack_step(x, h_prev, c_prev, weights):
    """Fused stacked-LSTM single-timestep update via one pallas_call."""
    L, B, H = h_prev.shape
    In = x.shape[1]
    Hp = weights.shape[2] // 4
    Kxp = weights.shape[1] - Hp

    # Lane-alignment plumbing (pad to 128-lane multiples).  Padded columns stay
    # exactly zero through the recurrence (zero weight rows/cols), so slicing
    # them off afterwards is exact.
    x_p = jnp.pad(x.astype(jnp.float32), ((0, 0), (0, Kxp - In)))
    h_p = jnp.pad(h_prev.astype(jnp.float32), ((0, 0), (0, 0), (0, Hp - H)))
    c_p = jnp.pad(c_prev.astype(jnp.float32), ((0, 0), (0, 0), (0, Hp - H)))

    kernel = functools.partial(
        _lstm_stack_kernel, hidden_p=Hp, kx_p=Kxp, num_layers=L)

    h_new_p, c_new_p = pl.pallas_call(
        kernel,
        out_shape=(
            jax.ShapeDtypeStruct((L, B, Hp), jnp.float32),   # new h state
            jax.ShapeDtypeStruct((L, B, Hp), jnp.float32),   # new c state
        ),
        grid_spec=pltpu.PrefetchScalarGridSpec(
            num_scalar_prefetch=0,
            grid=(1,),                                       # single grid step
            in_specs=[
                pl.BlockSpec((B, Kxp), lambda i: (0, 0)),               # x
                pl.BlockSpec((L, B, Hp), lambda i: (0, 0, 0)),          # h_prev
                pl.BlockSpec((L, B, Hp), lambda i: (0, 0, 0)),          # c_prev
                pl.BlockSpec((L, Kxp + Hp, 4 * Hp), lambda i: (0, 0, 0)),  # W (bf16)
            ],
            out_specs=(
                pl.BlockSpec((L, B, Hp), lambda i: (0, 0, 0)),          # h_new
                pl.BlockSpec((L, B, Hp), lambda i: (0, 0, 0)),          # c_new
            ),
            scratch_shapes=[pltpu.VMEM((B, Kxp + Hp), jnp.float32)],    # [x|h] slab
        ),
        compiler_params=pltpu.CompilerParams(
            dimension_semantics=("arbitrary",)),
    )(x_p, h_p, c_p, weights)

    h_new = h_new_p[:, :, :H].astype(h_prev.dtype)
    c_new = c_new_p[:, :, :H].astype(c_prev.dtype)
    out = h_new[L - 1]          # controller output == last layer's new hidden state
    return out, h_new, c_new


class LSTMControllerPallas:
    """JAX/Pallas port of the NTM LSTMController (single-timestep forward)."""

    def __init__(self, num_inputs, num_outputs, num_layers, key):
        self.num_inputs = num_inputs
        self.num_outputs = num_outputs
        self.num_layers = num_layers

        H = num_outputs
        self._hp = _round_up(H, 128)                       # lane-padded hidden
        self._kxp = _round_up(max(num_inputs, H), 128)     # lane-padded [x|h] input width
        Hp, Kxp = self._hp, self._kxp

        keys = jax.random.split(key, 2 * num_layers + 2)

        def xavier_uniform(k, shape):
            # PyTorch xavier_uniform_ (gain=1): fan_out = shape[0], fan_in = shape[1]
            fan_out, fan_in = shape
            bound = (6.0 / (fan_in + fan_out)) ** 0.5
            return jax.random.uniform(k, shape, jnp.float32, -bound, bound)

        # Packed, lane-padded per-layer weights.  Gate order along the last axis
        # is [i, f, g, o], each gate occupying Hp columns (first H meaningful).
        # Rows [0:in_l] = W_ih^T, rows [Kxp:Kxp+H] = W_hh^T, everything else zero.
        w = jnp.zeros((num_layers, Kxp + Hp, 4 * Hp), jnp.float32)
        self._w_ih, self._w_hh = [], []   # unpacked f32 copies (reference / export only)
        for l in range(num_layers):
            in_l = num_inputs if l == 0 else H
            w_ih = xavier_uniform(keys[2 * l], (4 * H, in_l))     # PyTorch layout
            w_hh = xavier_uniform(keys[2 * l + 1], (4 * H, H))
            self._w_ih.append(w_ih)
            self._w_hh.append(w_hh)
            w_ih_t = jnp.transpose(w_ih)   # (in_l, 4H)
            w_hh_t = jnp.transpose(w_hh)   # (H, 4H)
            for g in range(4):
                w = w.at[l, :in_l, g * Hp:g * Hp + H].set(w_ih_t[:, g * H:(g + 1) * H])
                w = w.at[l, Kxp:Kxp + H, g * Hp:g * Hp + H].set(w_hh_t[:, g * H:(g + 1) * H])
        # bf16 packed weights: MXU-native inputs, half the HBM/VMEM bytes.
        self.weights = w.astype(jnp.bfloat16)
        # nn.LSTM biases are all zeroed by reset_parameters() -> no bias term in the kernel.

        self.lstm_h_bias = jax.random.normal(keys[-2], (num_layers, 1, H), jnp.float32) * 0.05
        self.lstm_c_bias = jax.random.normal(keys[-1], (num_layers, 1, H), jnp.float32) * 0.05

    def create_new_state(self, batch_size):
        h = jnp.tile(self.lstm_h_bias, (1, batch_size, 1))
        c = jnp.tile(self.lstm_c_bias, (1, batch_size, 1))
        return h, c

    def size(self):
        return (self.num_inputs, self.num_outputs)

    def forward(self, x, prev_state):
        """x: (batch, num_inputs); prev_state: (h, c), each (L, batch, H)."""
        h_prev, c_prev = prev_state
        out, h_new, c_new = lstm_stack_step(x, h_prev, c_prev, self.weights)
        return out, (h_new, c_new)


def _reference_forward(ctrl, x, prev_state):
    """Pure-JAX reference: standard LSTM equations, PyTorch gate order i,f,g,o.

    Matmul operands are rounded to bf16 to mirror the kernel's MXU inputs
    (f32 accumulation), so this checks both the packed layout and the kernel.
    """
    h_prev, c_prev = prev_state
    H = ctrl.num_outputs
    bf = lambda a: a.astype(jnp.bfloat16).astype(jnp.float32)
    layer_in = x.astype(jnp.float32)
    hs, cs = [], []
    for l in range(ctrl.num_layers):
        w_ih = bf(ctrl._w_ih[l])   # (4H, in_l)
        w_hh = bf(ctrl._w_hh[l])   # (4H, H)
        gates = (jnp.dot(bf(layer_in), w_ih.T, precision=jax.lax.Precision.HIGHEST)
                 + jnp.dot(bf(h_prev[l]), w_hh.T, precision=jax.lax.Precision.HIGHEST))
        i = jax.nn.sigmoid(gates[:, 0 * H:1 * H])
        f = jax.nn.sigmoid(gates[:, 1 * H:2 * H])
        g = jnp.tanh(gates[:, 2 * H:3 * H])
        o = jax.nn.sigmoid(gates[:, 3 * H:4 * H])
        c_new = f * c_prev[l] + i * g
        h_new = o * jnp.tanh(c_new)
        hs.append(h_new)
        cs.append(c_new)
        layer_in = h_new
    return layer_in, (jnp.stack(hs), jnp.stack(cs))


if __name__ == "__main__":
    key = jax.random.PRNGKey(0)
    k_param, k_x0, k_x1 = jax.random.split(key, 3)

    batch = 2
    num_inputs = 32
    num_outputs = 32   # hidden size
    num_layers = 2

    ctrl = LSTMControllerPallas(num_inputs, num_outputs, num_layers, k_param)
    state = ctrl.create_new_state(batch)
    state_ref = (state[0], state[1])

    xs = [jax.random.normal(k_x0, (batch, num_inputs), jnp.float32),
          jax.random.normal(k_x1, (batch, num_inputs), jnp.float32)]

    # Two recurrent timesteps through the fused kernel, checked against pure JAX.
    for t, x in enumerate(xs):
        out, state = ctrl.forward(x, state)
        out = jax.block_until_ready(out)
        h_new = jax.block_until_ready(state[0])
        c_new = jax.block_until_ready(state[1])

        ref_out, state_ref = _reference_forward(ctrl, x, state_ref)

        assert out.shape == (batch, num_outputs)
        assert h_new.shape == (num_layers, batch, num_outputs)
        assert c_new.shape == (num_layers, batch, num_outputs)
        assert jnp.allclose(out, ref_out, atol=2e-4, rtol=1e-4), f"out mismatch at step {t}"
        assert jnp.allclose(h_new, state_ref[0], atol=2e-4, rtol=1e-4), f"h mismatch at step {t}"
        assert jnp.allclose(c_new, state_ref[1], atol=2e-4, rtol=1e-4), f"c mismatch at step {t}"

    print("KERNEL_OK")
</pallas_src>

<mosaic_0001>
module attributes {stable_mosaic.version = 11 : i64} {
  func.func @_lstm_stack_kernel(%arg0: i32, %arg1: memref<2x128xf32, #tpu.memory_space<vmem>>, %arg2: memref<2x2x128xf32, #tpu.memory_space<vmem>>, %arg3: memref<2x2x128xf32, #tpu.memory_space<vmem>>, %arg4: memref<2x256x512xbf16, #tpu.memory_space<vmem>>, %arg5: memref<2x2x128xf32, #tpu.memory_space<vmem>>, %arg6: memref<2x2x128xf32, #tpu.memory_space<vmem>>, %arg7: memref<2x256xf32, #tpu.memory_space<vmem>>) attributes {dimension_semantics = [#tpu.dimension_semantics<arbitrary>], iteration_bounds = array<i64: 1>, scalar_prefetch = 0 : i64, scratch_operands = 1 : i64, tpu.core_type = #tpu.core_type<tc>, window_params = [{pipeline_mode = #tpu.pipeline_mode<synchronous>, transform_indices = @transform_0, window_bounds = array<i64: 2, 128>}, {pipeline_mode = #tpu.pipeline_mode<synchronous>, transform_indices = @transform_1, window_bounds = array<i64: 2, 2, 128>}, {pipeline_mode = #tpu.pipeline_mode<synchronous>, transform_indices = @transform_2, window_bounds = array<i64: 2, 2, 128>}, {pipeline_mode = #tpu.pipeline_mode<synchronous>, transform_indices = @transform_3, window_bounds = array<i64: 2, 256, 512>}, {pipeline_mode = #tpu.pipeline_mode<synchronous>, transform_indices = @transform_4, window_bounds = array<i64: 2, 2, 128>}, {pipeline_mode = #tpu.pipeline_mode<synchronous>, transform_indices = @transform_5, window_bounds = array<i64: 2, 2, 128>}]} {
    %c0 = arith.constant 0 : index
    %c0_0 = arith.constant 0 : index
    %0 = vector.load %arg1[%c0, %c0_0] : memref<2x128xf32, #tpu.memory_space<vmem>>, vector<2x128xf32>
    %c0_1 = arith.constant 0 : index
    %c0_2 = arith.constant 0 : index
    %1 = vector.load %arg7[%c0_1, %c0_2] : memref<2x256xf32, #tpu.memory_space<vmem>>, vector<2x128xf32>
    tpu.vector_store %arg7[%c0_1, %c0_2], %0 {strides = array<i32>} : memref<2x256xf32, #tpu.memory_space<vmem>>, vector<2x128xf32>,
    %c0_3 = arith.constant 0 : index
    %c0_4 = arith.constant 0 : index
    %c0_5 = arith.constant 0 : index
    %2 = vector.load %arg2[%c0_3, %c0_4, %c0_5] : memref<2x2x128xf32, #tpu.memory_space<vmem>>, vector<1x2x128xf32>
    %3 = vector.shape_cast %2 : vector<1x2x128xf32> to vector<2x128xf32>
    %c0_6 = arith.constant 0 : index
    %c128 = arith.constant 128 : index
    %4 = vector.load %arg7[%c0_6, %c128] : memref<2x256xf32, #tpu.memory_space<vmem>>, vector<2x128xf32>
    tpu.vector_store %arg7[%c0_6, %c128], %3 {strides = array<i32>} : memref<2x256xf32, #tpu.memory_space<vmem>>, vector<2x128xf32>,
    %c0_7 = arith.constant 0 : index
    %c0_8 = arith.constant 0 : index
    %5 = vector.load %arg7[%c0_7, %c0_8] : memref<2x256xf32, #tpu.memory_space<vmem>>, vector<2x256xf32>
    %6 = arith.truncf %5 : vector<2x256xf32> to vector<2x256xbf16>
    %c0_9 = arith.constant 0 : index
    %c0_10 = arith.constant 0 : index
    %c0_11 = arith.constant 0 : index
    %7 = vector.load %arg4[%c0_9, %c0_10, %c0_11] : memref<2x256x512xbf16, #tpu.memory_space<vmem>>, vector<1x256x512xbf16>
    %8 = vector.shape_cast %7 : vector<1x256x512xbf16> to vector<256x512xbf16>
    %cst = arith.constant dense<0.000000e+00> : vector<2x512xf32>
    %9 = tpu.matmul %6, %8, %cst {dimension_numbers = #tpu.dot_dimension_numbers<[1], [0], [0], [1], [0, 0, 1, 1], [], []>} : vector<2x256xbf16>, vector<256x512xbf16>, vector<2x512xf32> -> vector<2x512xf32>
    %10 = vector.extract_strided_slice %9 {offsets = [0, 0], sizes = [2, 128], strides = [1, 1]} : vector<2x512xf32> to vector<2x128xf32>
    %cst_12 = arith.constant 5.000000e-01 : f32
    %11 = vector.broadcast %cst_12 : f32 to vector<2x128xf32>
    %12 = arith.mulf %11, %10 : vector<2x128xf32>
    %13 = math.tanh %12 : vector<2x128xf32>
    %cst_13 = arith.constant 1.000000e+00 : f32
    %14 = vector.broadcast %cst_13 : f32 to vector<2x128xf32>
    %15 = arith.addf %13, %14 : vector<2x128xf32>
    %cst_14 = arith.constant 5.000000e-01 : f32
    %16 = vector.broadcast %cst_14 : f32 to vector<2x128xf32>
    %17 = arith.mulf %16, %15 : vector<2x128xf32>
    %18 = vector.extract_strided_slice %9 {offsets = [0, 128], sizes = [2, 128], strides = [1, 1]} : vector<2x512xf32> to vector<2x128xf32>
    %cst_15 = arith.constant 5.000000e-01 : f32
    %19 = vector.broadcast %cst_15 : f32 to vector<2x128xf32>
    %20 = arith.mulf %19, %18 : vector<2x128xf32>
    %21 = math.tanh %20 : vector<2x128xf32>
    %cst_16 = arith.constant 1.000000e+00 : f32
    %22 = vector.broadcast %cst_16 : f32 to vector<2x128xf32>
    %23 = arith.addf %21, %22 : vector<2x128xf32>
    %cst_17 = arith.constant 5.000000e-01 : f32
    %24 = vector.broadcast %cst_17 : f32 to vector<2x128xf32>
    %25 = arith.mulf %24, %23 : vector<2x128xf32>
    %26 = vector.extract_strided_slice %9 {offsets = [0, 256], sizes = [2, 128], strides = [1, 1]} : vector<2x512xf32> to vector<2x128xf32>
    %27 = math.tanh %26 : vector<2x128xf32>
    %28 = vector.extract_strided_slice %9 {offsets = [0, 384], sizes = [2, 128], strides = [1, 1]} : vector<2x512xf32> to vector<2x128xf32>
    %cst_18 = arith.constant 5.000000e-01 : f32
    %29 = vector.broadcast %cst_18 : f32 to vector<2x128xf32>
    %30 = arith.mulf %29, %28 : vector<2x128xf32>
    %31 = math.tanh %30 : vector<2x128xf32>
    %cst_19 = arith.constant 1.000000e+00 : f32
    %32 = vector.broadcast %cst_19 : f32 to vector<2x128xf32>
    %33 = arith.addf %31, %32 : vector<2x128xf32>
    %cst_20 = arith.constant 5.000000e-01 : f32
    %34 = vector.broadcast %cst_20 : f32 to vector<2x128xf32>
    %35 = arith.mulf %34, %33 : vector<2x128xf32>
    %c0_21 = arith.constant 0 : index
    %c0_22 = arith.constant 0 : index
    %c0_23 = arith.constant 0 : index
    %36 = vector.load %arg3[%c0_21, %c0_22, %c0_23] : memref<2x2x128xf32, #tpu.memory_space<vmem>>, vector<1x2x128xf32>
    %37 = vector.shape_cast %36 : vector<1x2x128xf32> to vector<2x128xf32>
    %38 = arith.mulf %25, %37 : vector<2x128xf32>
    %39 = arith.mulf %17, %27 : vector<2x128xf32>
    %40 = arith.addf %38, %39 : vector<2x128xf32>
    %41 = math.tanh %40 : vector<2x128xf32>
    %42 = arith.mulf %35, %41 : vector<2x128xf32>
    %c0_24 = arith.constant 0 : index
    %c0_25 = arith.constant 0 : index
    %c0_26 = arith.constant 0 : index
    %43 = vector.load %arg5[%c0_24, %c0_25, %c0_26] : memref<2x2x128xf32, #tpu.memory_space<vmem>>, vector<1x2x128xf32>
    %44 = vector.shape_cast %43 : vector<1x2x128xf32> to vector<2x128xf32>
    %45 = vector.shape_cast %42 : vector<2x128xf32> to vector<1x2x128xf32>
    tpu.vector_store %arg5[%c0_24, %c0_25, %c0_26], %45 {strides = array<i32>} : memref<2x2x128xf32, #tpu.memory_space<vmem>>, vector<1x2x128xf32>,
    %c0_27 = arith.constant 0 : index
    %c0_28 = arith.constant 0 : index
    %c0_29 = arith.constant 0 : index
    %46 = vector.load %arg6[%c0_27, %c0_28, %c0_29] : memref<2x2x128xf32, #tpu.memory_space<vmem>>, vector<1x2x128xf32>
    %47 = vector.shape_cast %46 : vector<1x2x128xf32> to vector<2x128xf32>
    %48 = vector.shape_cast %40 : vector<2x128xf32> to vector<1x2x128xf32>
    tpu.vector_store %arg6[%c0_27, %c0_28, %c0_29], %48 {strides = array<i32>} : memref<2x2x128xf32, #tpu.memory_space<vmem>>, vector<1x2x128xf32>,
    %c0_30 = arith.constant 0 : index
    %c0_31 = arith.constant 0 : index
    %49 = vector.load %arg7[%c0_30, %c0_31] : memref<2x256xf32, #tpu.memory_space<vmem>>, vector<2x128xf32>
    tpu.vector_store %arg7[%c0_30, %c0_31], %42 {strides = array<i32>} : memref<2x256xf32, #tpu.memory_space<vmem>>, vector<2x128xf32>,
    %c1 = arith.constant 1 : index
    %c0_32 = arith.constant 0 : index
    %c0_33 = arith.constant 0 : index
    %50 = vector.load %arg2[%c1, %c0_32, %c0_33] : memref<2x2x128xf32, #tpu.memory_space<vmem>>, vector<1x2x128xf32>
    %51 = vector.shape_cast %50 : vector<1x2x128xf32> to vector<2x128xf32>
    %c0_34 = arith.constant 0 : index
    %c128_35 = arith.constant 128 : index
    %52 = vector.load %arg7[%c0_34, %c128_35] : memref<2x256xf32, #tpu.memory_space<vmem>>, vector<2x128xf32>
    tpu.vector_store %arg7[%c0_34, %c128_35], %51 {strides = array<i32>} : memref<2x256xf32, #tpu.memory_space<vmem>>, vector<2x128xf32>,
    %c0_36 = arith.constant 0 : index
    %c0_37 = arith.constant 0 : index
    %53 = vector.load %arg7[%c0_36, %c0_37] : memref<2x256xf32, #tpu.memory_space<vmem>>, vector<2x256xf32>
    %54 = arith.truncf %53 : vector<2x256xf32> to vector<2x256xbf16>
    %c1_38 = arith.constant 1 : index
    %c0_39 = arith.constant 0 : index
    %c0_40 = arith.constant 0 : index
    %55 = vector.load %arg4[%c1_38, %c0_39, %c0_40] : memref<2x256x512xbf16, #tpu.memory_space<vmem>>, vector<1x256x512xbf16>
    %56 = vector.shape_cast %55 : vector<1x256x512xbf16> to vector<256x512xbf16>
    %cst_41 = arith.constant dense<0.000000e+00> : vector<2x512xf32>
    %57 = tpu.matmul %54, %56, %cst_41 {dimension_numbers = #tpu.dot_dimension_numbers<[1], [0], [0], [1], [0, 0, 1, 1], [], []>} : vector<2x256xbf16>, vector<256x512xbf16>, vector<2x512xf32> -> vector<2x512xf32>
    %58 = vector.extract_strided_slice %57 {offsets = [0, 0], sizes = [2, 128], strides = [1, 1]} : vector<2x512xf32> to vector<2x128xf32>
    %cst_42 = arith.constant 5.000000e-01 : f32
    %59 = vector.broadcast %cst_42 : f32 to vector<2x128xf32>
    %60 = arith.mulf %59, %58 : vector<2x128xf32>
    %61 = math.tanh %60 : vector<2x128xf32>
    %cst_43 = arith.constant 1.000000e+00 : f32
    %62 = vector.broadcast %cst_43 : f32 to vector<2x128xf32>
    %63 = arith.addf %61, %62 : vector<2x128xf32>
    %cst_44 = arith.constant 5.000000e-01 : f32
    %64 = vector.broadcast %cst_44 : f32 to vector<2x128xf32>
    %65 = arith.mulf %64, %63 : vector<2x128xf32>
    %66 = vector.extract_strided_slice %57 {offsets = [0, 128], sizes = [2, 128], strides = [1, 1]} : vector<2x512xf32> to vector<2x128xf32>
    %cst_45 = arith.constant 5.000000e-01 : f32
    %67 = vector.broadcast %cst_45 : f32 to vector<2x128xf32>
    %68 = arith.mulf %67, %66 : vector<2x128xf32>
    %69 = math.tanh %68 : vector<2x128xf32>
    %cst_46 = arith.constant 1.000000e+00 : f32
    %70 = vector.broadcast %cst_46 : f32 to vector<2x128xf32>
    %71 = arith.addf %69, %70 : vector<2x128xf32>
    %cst_47 = arith.constant 5.000000e-01 : f32
    %72 = vector.broadcast %cst_47 : f32 to vector<2x128xf32>
    %73 = arith.mulf %72, %71 : vector<2x128xf32>
    %74 = vector.extract_strided_slice %57 {offsets = [0, 256], sizes = [2, 128], strides = [1, 1]} : vector<2x512xf32> to vector<2x128xf32>
    %75 = math.tanh %74 : vector<2x128xf32>
    %76 = vector.extract_strided_slice %57 {offsets = [0, 384], sizes = [2, 128], strides = [1, 1]} : vector<2x512xf32> to vector<2x128xf32>
    %cst_48 = arith.constant 5.000000e-01 : f32
    %77 = vector.broadcast %cst_48 : f32 to vector<2x128xf32>
    %78 = arith.mulf %77, %76 : vector<2x128xf32>
    %79 = math.tanh %78 : vector<2x128xf32>
    %cst_49 = arith.constant 1.000000e+00 : f32
    %80 = vector.broadcast %cst_49 : f32 to vector<2x128xf32>
    %81 = arith.addf %79, %80 : vector<2x128xf32>
    %cst_50 = arith.constant 5.000000e-01 : f32
    %82 = vector.broadcast %cst_50 : f32 to vector<2x128xf32>
    %83 = arith.mulf %82, %81 : vector<2x128xf32>
    %c1_51 = arith.constant 1 : index
    %c0_52 = arith.constant 0 : index
    %c0_53 = arith.constant 0 : index
    %84 = vector.load %arg3[%c1_51, %c0_52, %c0_53] : memref<2x2x128xf32, #tpu.memory_space<vmem>>, vector<1x2x128xf32>
    %85 = vector.shape_cast %84 : vector<1x2x128xf32> to vector<2x128xf32>
    %86 = arith.mulf %73, %85 : vector<2x128xf32>
    %87 = arith.mulf %65, %75 : vector<2x128xf32>
    %88 = arith.addf %86, %87 : vector<2x128xf32>
    %89 = math.tanh %88 : vector<2x128xf32>
    %90 = arith.mulf %83, %89 : vector<2x128xf32>
    %c1_54 = arith.constant 1 : index
    %c0_55 = arith.constant 0 : index
    %c0_56 = arith.constant 0 : index
    %91 = vector.load %arg5[%c1_54, %c0_55, %c0_56] : memref<2x2x128xf32, #tpu.memory_space<vmem>>, vector<1x2x128xf32>
    %92 = vector.shape_cast %91 : vector<1x2x128xf32> to vector<2x128xf32>
    %93 = vector.shape_cast %90 : vector<2x128xf32> to vector<1x2x128xf32>
    tpu.vector_store %arg5[%c1_54, %c0_55, %c0_56], %93 {strides = array<i32>} : memref<2x2x128xf32, #tpu.memory_space<vmem>>, vector<1x2x128xf32>,
    %c1_57 = arith.constant 1 : index
    %c0_58 = arith.constant 0 : index
    %c0_59 = arith.constant 0 : index
    %94 = vector.load %arg6[%c1_57, %c0_58, %c0_59] : memref<2x2x128xf32, #tpu.memory_space<vmem>>, vector<1x2x128xf32>
    %95 = vector.shape_cast %94 : vector<1x2x128xf32> to vector<2x128xf32>
    %96 = vector.shape_cast %88 : vector<2x128xf32> to vector<1x2x128xf32>
    tpu.vector_store %arg6[%c1_57, %c0_58, %c0_59], %96 {strides = array<i32>} : memref<2x2x128xf32, #tpu.memory_space<vmem>>, vector<1x2x128xf32>,
    return
  }
  func.func @transform_0(%arg0: i32) -> (i32, i32) {
    %c0_i32 = arith.constant 0 : i32
    %c0_i32_0 = arith.constant 0 : i32
    %c0_i32_1 = arith.constant 0 : i32
    return %c0_i32, %c0_i32_0 : i32, i32
  }
  func.func @transform_1(%arg0: i32) -> (i32, i32, i32) {
    %c0_i32 = arith.constant 0 : i32
    %c0_i32_0 = arith.constant 0 : i32
    %c0_i32_1 = arith.constant 0 : i32
    %c0_i32_2 = arith.constant 0 : i32
    return %c0_i32, %c0_i32_0, %c0_i32_1 : i32, i32, i32
  }
  func.func @transform_2(%arg0: i32) -> (i32, i32, i32) {
    %c0_i32 = arith.constant 0 : i32
    %c0_i32_0 = arith.constant 0 : i32
    %c0_i32_1 = arith.constant 0 : i32
    %c0_i32_2 = arith.constant 0 : i32
    return %c0_i32, %c0_i32_0, %c0_i32_1 : i32, i32, i32
  }
  func.func @transform_3(%arg0: i32) -> (i32, i32, i32) {
    %c0_i32 = arith.constant 0 : i32
    %c0_i32_0 = arith.constant 0 : i32
    %c0_i32_1 = arith.constant 0 : i32
    %c0_i32_2 = arith.constant 0 : i32
    return %c0_i32, %c0_i32_0, %c0_i32_1 : i32, i32, i32
  }
  func.func @transform_4(%arg0: i32) -> (i32, i32, i32) {
    %c0_i32 = arith.constant 0 : i32
    %c0_i32_0 = arith.constant 0 : i32
    %c0_i32_1 = arith.constant 0 : i32
    %c0_i32_2 = arith.constant 0 : i32
    return %c0_i32, %c0_i32_0, %c0_i32_1 : i32, i32, i32
  }
  func.func @transform_5(%arg0: i32) -> (i32, i32, i32) {
    %c0_i32 = arith.constant 0 : i32
    %c0_i32_0 = arith.constant 0 : i32
    %c0_i32_1 = arith.constant 0 : i32
    %c0_i32_2 = arith.constant 0 : i32
    return %c0_i32, %c0_i32_0, %c0_i32_1 : i32, i32, i32
  }
}

</mosaic_0001>

<llo_original>
// kernel: lstm_stack_step.1
$region0: #{lstm_stack_step.1}
  #allocation0 [shape = 'u32[]', space=smem, size = 0x4, offset = 0x4, fixed_abs, tag = 'smem constant byte address 0x4 - core index']
  #allocation1 [shape = 'u32[144,128]{1,0:T(1,128)}', space=vmem, size = 0x12000, scoped, tag = 'internal scratch']
  #allocation2 [shape = 'f32[2,256]{1,0:T(2,128)}', space=vmem, size = 0x800, scoped, tag = 'scratch operand']
  %s0 = inlined_call_operand.vmem [shape: f32[2,128], index: 0, kind: input, shape index: {}]
  %s1 = inlined_call_operand.vmem [shape: f32[2,2,128], index: 1, kind: input, shape index: {}]
  %s2 = inlined_call_operand.vmem [shape: f32[2,2,128], index: 2, kind: input, shape index: {}]
  %s3 = inlined_call_operand.hbm [shape: bf16[2,256,512], index: 3, kind: input, shape index: {}]
  %s4 = inlined_call_operand.vmem [shape: f32[2,2,128], index: 4, kind: output, shape index: {0}]
  %s5 = inlined_call_operand.hbm [shape: f32[2,2,128], index: 5, kind: output, shape index: {1}]
  %6 = xla_tuple %s4, %s5
  %s7 = sld [smem:[#allocation0]]
  $region38: #{lstm_stack_step.1} parent=0
    _
  %s9 = ssub.s32 1, %s7
  %s10 = scalar_select 0, %s9, %s7
  $region1: #{lstm_stack_step.1} parent=0
    #allocation3 [shape = 'u8[524288]{0}', space=vmem, size = 0x80000, scoped, tag = 'input window, operand 3, single buffered']
    #allocation4 [shape = 's32[1]{0}', space=sflag, size = 0x4, scoped, tag = 'scoped memory for lstm_stack_step.1']
    #allocation5 [shape = 's32[1]{0}', space=sflag, size = 0x4, scoped, tag = 'scoped memory for lstm_stack_step.1']
    #allocation6 [shape = 'u8[2048]{0}', space=vmem, size = 0x800, scoped, tag = 'output window, operand 1, single buffered']
    %11 = vsyncpa [#allocation4], 0
    %12 = vsyncpa [#allocation5], 0
    // Predicated region
    $region2: #{lstm_stack_step.1} parent=1 // pred_check
      _
    $region3: #{lstm_stack_step.1} parent=1 // pred_check_branch
      %14 = sbr.rel (0) target = $region5
    $region4: #{lstm_stack_step.1} parent=1 // pred_region
      _
    $region5: #{lstm_stack_step.1} parent=1 // pred_fallthru
      _
    // Predicated region
    $region6: #{lstm_stack_step.1} parent=1 // pred_check
      _
    $region7: #{lstm_stack_step.1} parent=1 // pred_check_branch
      %16 = sbr.rel (0) target = $region9
    $region8: #{lstm_stack_step.1} parent=1 // pred_region
      _
    $region9: #{lstm_stack_step.1} parent=1 // pred_fallthru
      _
    // Predicated region
    $region10: #{lstm_stack_step.1} parent=1 // pred_check
      _
    $region11: #{lstm_stack_step.1} parent=1 // pred_check_branch
      %18 = sbr.rel (0) target = $region13
    $region12: #{lstm_stack_step.1} parent=1 // pred_region
      _
    $region13: #{lstm_stack_step.1} parent=1 // pred_fallthru
      _
    // Predicated region
    $region14: #{lstm_stack_step.1} parent=1 // pred_check
      _
    $region15: #{lstm_stack_step.1} parent=1 // pred_check_branch
      %20 = sbr.rel (0) target = $region17
    $region16: #{lstm_stack_step.1} parent=1 // pred_region
      %s22 = ssub.s32 16384, 16384
      %23 = vsyncadd [#allocation4], %s22
      %s24 = sshll.u32 [#allocation3], 4
      %s25 = int_to_ptr.vmem [resolvable:$true] %s24
      %30 = dma.hbm_to_vmem [thread:$0]  %s3, 16384, %s25, [#allocation4], 256, 256, 16
    $region17: #{lstm_stack_step.1} parent=1 // pred_fallthru
      _
    // Predicated region
    $region18: #{lstm_stack_step.1} parent=1 // pred_check
      _
    $region19: #{lstm_stack_step.1} parent=1 // pred_check_branch
      %32 = sbr.rel (0) target = $region21
    $region20: #{lstm_stack_step.1} parent=1 // pred_region
      %33 = dma.done [#allocation4], 16384
    $region21: #{lstm_stack_step.1} parent=1 // pred_fallthru
      _
    %v34 = vld [vmem:[%s0] sm:$0x3]
    %35 = vst [vmem:[#allocation2] sm:$0x3] %v34
    %v36 = vld [vmem:[%s1] sm:$0x3]
    %37 = vst [vmem:[#allocation2 + $0x2] sm:$0x3] %v36
    %v38 = vld [vmem:[#allocation2] sm:$0xf]
    %v41 = vunpack.c.l.s4 1983009808
    %v42 = vunpack.c.0.s8 %v41
    %v43 = vlaneseq
    %v44 = vshrl.u32 %v43, 7
    %v45 = vsub.s32 %v42, %v44
    %v46 = vrot.slane %v38, %v45
    %v47 = vcombine.high %v46, %v46
    %v50 = vpack.c.bf16 %v46, %v46
    %v51 = vpack.c.bf16 %v47, %v47
    %v52 = vld [vmem:[#allocation3] sm:$0xff]
    %v53 = vld [vmem:[#allocation3 + $0x8] sm:$0xff]
    %v54 = vld [vmem:[#allocation3 + $0x10] sm:$0xff]
    %v55 = vld [vmem:[#allocation3 + $0x18] sm:$0xff]
    %v56 = vld [vmem:[#allocation3 + $0x20] sm:$0xff]
    %v57 = vld [vmem:[#allocation3 + $0x28] sm:$0xff]
    %v58 = vld [vmem:[#allocation3 + $0x30] sm:$0xff]
    %v59 = vld [vmem:[#allocation3 + $0x38] sm:$0xff]
    %v60 = vld [vmem:[#allocation3 + $0x40] sm:$0xff]
    %v61 = vld [vmem:[#allocation3 + $0x48] sm:$0xff]
    %v62 = vld [vmem:[#allocation3 + $0x50] sm:$0xff]
    %v63 = vld [vmem:[#allocation3 + $0x58] sm:$0xff]
    %v64 = vld [vmem:[#allocation3 + $0x60] sm:$0xff]
    %v65 = vld [vmem:[#allocation3 + $0x68] sm:$0xff]
    %v66 = vld [vmem:[#allocation3 + $0x70] sm:$0xff]
    %v67 = vld [vmem:[#allocation3 + $0x78] sm:$0xff]
    %v68 = vld [vmem:[#allocation3 + $0x80] sm:$0xff]
    %v69 = vld [vmem:[#allocation3 + $0x88] sm:$0xff]
    %v70 = vld [vmem:[#allocation3 + $0x90] sm:$0xff]
    %v71 = vld [vmem:[#allocation3 + $0x98] sm:$0xff]
    %v72 = vld [vmem:[#allocation3 + $0xa0] sm:$0xff]
    %v73 = vld [vmem:[#allocation3 + $0xa8] sm:$0xff]
    %v74 = vld [vmem:[#allocation3 + $0xb0] sm:$0xff]
    %v75 = vld [vmem:[#allocation3 + $0xb8] sm:$0xff]
    %v76 = vld [vmem:[#allocation3 + $0xc0] sm:$0xff]
    %v77 = vld [vmem:[#allocation3 + $0xc8] sm:$0xff]
    %v78 = vld [vmem:[#allocation3 + $0xd0] sm:$0xff]
    %v79 = vld [vmem:[#allocation3 + $0xd8] sm:$0xff]
    %v80 = vld [vmem:[#allocation3 + $0xe0] sm:$0xff]
    %v81 = vld [vmem:[#allocation3 + $0xe8] sm:$0xff]
    %v82 = vld [vmem:[#allocation3 + $0xf0] sm:$0xff]
    %v83 = vld [vmem:[#allocation3 + $0xf8] sm:$0xff]
    %v84 = vld [vmem:[#allocation3 + $0x100] sm:$0xff]
    %v85 = vld [vmem:[#allocation3 + $0x108] sm:$0xff]
    %v86 = vld [vmem:[#allocation3 + $0x110] sm:$0xff]
    %v87 = vld [vmem:[#allocation3 + $0x118] sm:$0xff]
    %v88 = vld [vmem:[#allocation3 + $0x120] sm:$0xff]
    %v89 = vld [vmem:[#allocation3 + $0x128] sm:$0xff]
    %v90 = vld [vmem:[#allocation3 + $0x130] sm:$0xff]
    %v91 = vld [vmem:[#allocation3 + $0x138] sm:$0xff]
    %v92 = vld [vmem:[#allocation3 + $0x140] sm:$0xff]
    %v93 = vld [vmem:[#allocation3 + $0x148] sm:$0xff]
    %v94 = vld [vmem:[#allocation3 + $0x150] sm:$0xff]
    %v95 = vld [vmem:[#allocation3 + $0x158] sm:$0xff]
    %v96 = vld [vmem:[#allocation3 + $0x160] sm:$0xff]
    %v97 = vld [vmem:[#allocation3 + $0x168] sm:$0xff]
    %v98 = vld [vmem:[#allocation3 + $0x170] sm:$0xff]
    %v99 = vld [vmem:[#allocation3 + $0x178] sm:$0xff]
    %v100 = vld [vmem:[#allocation3 + $0x180] sm:$0xff]
    %v101 = vld [vmem:[#allocation3 + $0x188] sm:$0xff]
    %v102 = vld [vmem:[#allocation3 + $0x190] sm:$0xff]
    %v103 = vld [vmem:[#allocation3 + $0x198] sm:$0xff]
    %v104 = vld [vmem:[#allocation3 + $0x1a0] sm:$0xff]
    %v105 = vld [vmem:[#allocation3 + $0x1a8] sm:$0xff]
    %v106 = vld [vmem:[#allocation3 + $0x1b0] sm:$0xff]
    %v107 = vld [vmem:[#allocation3 + $0x1b8] sm:$0xff]
    %v108 = vld [vmem:[#allocation3 + $0x1c0] sm:$0xff]
    %v109 = vld [vmem:[#allocation3 + $0x1c8] sm:$0xff]
    %v110 = vld [vmem:[#allocation3 + $0x1d0] sm:$0xff]
    %v111 = vld [vmem:[#allocation3 + $0x1d8] sm:$0xff]
    %v112 = vld [vmem:[#allocation3 + $0x1e0] sm:$0xff]
    %v113 = vld [vmem:[#allocation3 + $0x1e8] sm:$0xff]
    %v114 = vld [vmem:[#allocation3 + $0x1f0] sm:$0xff]
    %v115 = vld [vmem:[#allocation3 + $0x1f8] sm:$0xff]
    %v180 = vunpack.c.l.b16 %v52
    %v181 = vunpack.c.h.b16 %v52
    %v182 = vunpack.c.l.b16 %v53
    %v183 = vunpack.c.h.b16 %v53
    %v184 = vunpack.c.l.b16 %v54
    %v185 = vunpack.c.h.b16 %v54
    %v186 = vunpack.c.l.b16 %v55
    %v187 = vunpack.c.h.b16 %v55
    %v188 = vunpack.c.l.b16 %v56
    %v189 = vunpack.c.h.b16 %v56
    %v190 = vunpack.c.l.b16 %v57
    %v191 = vunpack.c.h.b16 %v57
    %v192 = vunpack.c.l.b16 %v58
    %v193 = vunpack.c.h.b16 %v58
    %v194 = vunpack.c.l.b16 %v59
    %v195 = vunpack.c.h.b16 %v59
    %v196 = vunpack.c.l.b16 %v60
    %v197 = vunpack.c.h.b16 %v60
    %v198 = vunpack.c.l.b16 %v61
    %v199 = vunpack.c.h.b16 %v61
    %v200 = vunpack.c.l.b16 %v62
    %v201 = vunpack.c.h.b16 %v62
    %v202 = vunpack.c.l.b16 %v63
    %v203 = vunpack.c.h.b16 %v63
    %v204 = vunpack.c.l.b16 %v64
    %v205 = vunpack.c.h.b16 %v64
    %v206 = vunpack.c.l.b16 %v65
    %v207 = vunpack.c.h.b16 %v65
    %v208 = vunpack.c.l.b16 %v66
    %v209 = vunpack.c.h.b16 %v66
    %v210 = vunpack.c.l.b16 %v67
    %v211 = vunpack.c.h.b16 %v67
    %v212 = vunpack.c.l.b16 %v68
    %v213 = vunpack.c.h.b16 %v68
    %v214 = vunpack.c.l.b16 %v69
    %v215 = vunpack.c.h.b16 %v69
    %v216 = vunpack.c.l.b16 %v70
    %v217 = vunpack.c.h.b16 %v70
    %v218 = vunpack.c.l.b16 %v71
    %v219 = vunpack.c.h.b16 %v71
    %v220 = vunpack.c.l.b16 %v72
    %v221 = vunpack.c.h.b16 %v72
    %v222 = vunpack.c.l.b16 %v73
    %v223 = vunpack.c.h.b16 %v73
    %v224 = vunpack.c.l.b16 %v74
    %v225 = vunpack.c.h.b16 %v74
    %v226 = vunpack.c.l.b16 %v75
    %v227 = vunpack.c.h.b16 %v75
    %v228 = vunpack.c.l.b16 %v76
    %v229 = vunpack.c.h.b16 %v76
    %v230 = vunpack.c.l.b16 %v77
    %v231 = vunpack.c.h.b16 %v77
    %v232 = vunpack.c.l.b16 %v78
    %v233 = vunpack.c.h.b16 %v78
    %v234 = vunpack.c.l.b16 %v79
    %v235 = vunpack.c.h.b16 %v79
    %v236 = vunpack.c.l.b16 %v80
    %v237 = vunpack.c.h.b16 %v80
    %v238 = vunpack.c.l.b16 %v81
    %v239 = vunpack.c.h.b16 %v81
    %v240 = vunpack.c.l.b16 %v82
    %v241 = vunpack.c.h.b16 %v82
    %v242 = vunpack.c.l.b16 %v83
    %v243 = vunpack.c.h.b16 %v83
    %v244 = vunpack.c.l.b16 %v84
    %v245 = vunpack.c.h.b16 %v84
    %v246 = vunpack.c.l.b16 %v85
    %v247 = vunpack.c.h.b16 %v85
    %v248 = vunpack.c.l.b16 %v86
    %v249 = vunpack.c.h.b16 %v86
    %v250 = vunpack.c.l.b16 %v87
    %v251 = vunpack.c.h.b16 %v87
    %v252 = vunpack.c.l.b16 %v88
    %v253 = vunpack.c.h.b16 %v88
    %v254 = vunpack.c.l.b16 %v89
    %v255 = vunpack.c.h.b16 %v89
    %v256 = vunpack.c.l.b16 %v90
    %v257 = vunpack.c.h.b16 %v90
    %v258 = vunpack.c.l.b16 %v91
    %v259 = vunpack.c.h.b16 %v91
    %v260 = vunpack.c.l.b16 %v92
    %v261 = vunpack.c.h.b16 %v92
    %v262 = vunpack.c.l.b16 %v93
    %v263 = vunpack.c.h.b16 %v93
    %v264 = vunpack.c.l.b16 %v94
    %v265 = vunpack.c.h.b16 %v94
    %v266 = vunpack.c.l.b16 %v95
    %v267 = vunpack.c.h.b16 %v95
    %v268 = vunpack.c.l.b16 %v96
    %v269 = vunpack.c.h.b16 %v96
    %v270 = vunpack.c.l.b16 %v97
    %v271 = vunpack.c.h.b16 %v97
    %v272 = vunpack.c.l.b16 %v98
    %v273 = vunpack.c.h.b16 %v98
    %v274 = vunpack.c.l.b16 %v99
    %v275 = vunpack.c.h.b16 %v99
    %v276 = vunpack.c.l.b16 %v100
    %v277 = vunpack.c.h.b16 %v100
    %v278 = vunpack.c.l.b16 %v101
    %v279 = vunpack.c.h.b16 %v101
    %v280 = vunpack.c.l.b16 %v102
    %v281 = vunpack.c.h.b16 %v102
    %v282 = vunpack.c.l.b16 %v103
    %v283 = vunpack.c.h.b16 %v103
    %v284 = vunpack.c.l.b16 %v104
    %v285 = vunpack.c.h.b16 %v104
    %v286 = vunpack.c.l.b16 %v105
    %v287 = vunpack.c.h.b16 %v105
    %v288 = vunpack.c.l.b16 %v106
    %v289 = vunpack.c.h.b16 %v106
    %v290 = vunpack.c.l.b16 %v107
    %v291 = vunpack.c.h.b16 %v107
    %v292 = vunpack.c.l.b16 %v108
    %v293 = vunpack.c.h.b16 %v108
    %v294 = vunpack.c.l.b16 %v109
    %v295 = vunpack.c.h.b16 %v109
    %v296 = vunpack.c.l.b16 %v110
    %v297 = vunpack.c.h.b16 %v110
    %v298 = vunpack.c.l.b16 %v111
    %v299 = vunpack.c.h.b16 %v111
    %v300 = vunpack.c.l.b16 %v112
    %v301 = vunpack.c.h.b16 %v112
    %v302 = vunpack.c.l.b16 %v113
    %v303 = vunpack.c.h.b16 %v113
    %v304 = vunpack.c.l.b16 %v114
    %v305 = vunpack.c.h.b16 %v114
    %v306 = vunpack.c.l.b16 %v115
    %v307 = vunpack.c.h.b16 %v115
    %v308 = vpack.c.b16 %v184, %v180
    %v309 = vpack.c.b16 %v185, %v181
    %v310 = vpack.c.b16 %v186, %v182
    %v311 = vpack.c.b16 %v187, %v183
    %v312 = vpack.c.b16 %v192, %v188
    %v313 = vpack.c.b16 %v193, %v189
    %v314 = vpack.c.b16 %v194, %v190
    %v315 = vpack.c.b16 %v195, %v191
    %v316 = vpack.c.b16 %v200, %v196
    %v317 = vpack.c.b16 %v201, %v197
    %v318 = vpack.c.b16 %v202, %v198
    %v319 = vpack.c.b16 %v203, %v199
    %v320 = vpack.c.b16 %v208, %v204
    %v321 = vpack.c.b16 %v209, %v205
    %v322 = vpack.c.b16 %v210, %v206
    %v323 = vpack.c.b16 %v211, %v207
    %v324 = vpack.c.b16 %v216, %v212
    %v325 = vpack.c.b16 %v217, %v213
    %v326 = vpack.c.b16 %v218, %v214
    %v327 = vpack.c.b16 %v219, %v215
    %v328 = vpack.c.b16 %v224, %v220
    %v329 = vpack.c.b16 %v225, %v221
    %v330 = vpack.c.b16 %v226, %v222
    %v331 = vpack.c.b16 %v227, %v223
    %v332 = vpack.c.b16 %v232, %v228
    %v333 = vpack.c.b16 %v233, %v229
    %v334 = vpack.c.b16 %v234, %v230
    %v335 = vpack.c.b16 %v235, %v231
    %v336 = vpack.c.b16 %v240, %v236
    %v337 = vpack.c.b16 %v241, %v237
    %v338 = vpack.c.b16 %v242, %v238
    %v339 = vpack.c.b16 %v243, %v239
    %v340 = vpack.c.b16 %v248, %v244
    %v341 = vpack.c.b16 %v249, %v245
    %v342 = vpack.c.b16 %v250, %v246
    %v343 = vpack.c.b16 %v251, %v247
    %v344 = vpack.c.b16 %v256, %v252
    %v345 = vpack.c.b16 %v257, %v253
    %v346 = vpack.c.b16 %v258, %v254
    %v347 = vpack.c.b16 %v259, %v255
    %v348 = vpack.c.b16 %v264, %v260
    %v349 = vpack.c.b16 %v265, %v261
    %v350 = vpack.c.b16 %v266, %v262
    %v351 = vpack.c.b16 %v267, %v263
    %v352 = vpack.c.b16 %v272, %v268
    %v353 = vpack.c.b16 %v273, %v269
    %v354 = vpack.c.b16 %v274, %v270
    %v355 = vpack.c.b16 %v275, %v271
    %v356 = vpack.c.b16 %v280, %v276
    %v357 = vpack.c.b16 %v281, %v277
    %v358 = vpack.c.b16 %v282, %v278
    %v359 = vpack.c.b16 %v283, %v279
    %v360 = vpack.c.b16 %v288, %v284
    %v361 = vpack.c.b16 %v289, %v285
    %v362 = vpack.c.b16 %v290, %v286
    %v363 = vpack.c.b16 %v291, %v287
    %v364 = vpack.c.b16 %v296, %v292
    %v365 = vpack.c.b16 %v297, %v293
    %v366 = vpack.c.b16 %v298, %v294
    %v367 = vpack.c.b16 %v299, %v295
    %v368 = vpack.c.b16 %v304, %v300
    %v369 = vpack.c.b16 %v305, %v301
    %v370 = vpack.c.b16 %v306, %v302
    %v371 = vpack.c.b16 %v307, %v303
    %436 = vmatprep.subr.bf16.mxu0 %v309
    %437 = vmatpush1.bf16.msra.mxu0 %v308
    %438 = vmatprep.subr.bf16.mxu0 %v313
    %439 = vmatpush1.bf16.msra.mxu0 %v312
    %440 = vmatprep.subr.bf16.mxu0 %v317
    %441 = vmatpush1.bf16.msra.mxu0 %v316
    %442 = vmatprep.subr.bf16.mxu0 %v321
    %443 = vmatpush1.bf16.msra.mxu0 %v320
    %444 = vmatprep.subr.bf16.mxu0 %v325
    %445 = vmatpush1.bf16.msra.mxu0 %v324
    %446 = vmatprep.subr.bf16.mxu0 %v329
    %447 = vmatpush1.bf16.msra.mxu0 %v328
    %448 = vmatprep.subr.bf16.mxu0 %v333
    %449 = vmatpush1.bf16.msra.mxu0 %v332
    %450 = vmatprep.subr.bf16.mxu0 %v337
    %451 = vmatpush1.bf16.msra.mxu0 %v336
    %452 = vmatprep.subr.bf16.mxu0 %v341
    %453 = vmatpush1.bf16.msra.mxu0 %v340
    %454 = vmatprep.subr.bf16.mxu0 %v345
    %455 = vmatpush1.bf16.msra.mxu0 %v344
    %456 = vmatprep.subr.bf16.mxu0 %v349
    %457 = vmatpush1.bf16.msra.mxu0 %v348
    %458 = vmatprep.subr.bf16.mxu0 %v353
    %459 = vmatpush1.bf16.msra.mxu0 %v352
    %460 = vmatprep.subr.bf16.mxu0 %v357
    %461 = vmatpush1.bf16.msra.mxu0 %v356
    %462 = vmatprep.subr.bf16.mxu0 %v361
    %463 = vmatpush1.bf16.msra.mxu0 %v360
    %464 = vmatprep.subr.bf16.mxu0 %v365
    %465 = vmatpush1.bf16.msra.mxu0 %v364
    %466 = vmatprep.subr.bf16.mxu0 %v369
    %467 = vmatpush1.bf16.msra.mxu0 %v368
    %468 = vmatprep.mubr.bf16.mxu0 %v51
    %469 = vmatmul.mubr.bf16.gmra.mrb[0].mxu0 %v50
    %v470 = vpop.f32.mrb[0].mxu0
    %v471 = vadd.f32 0.0, %v470
    %v472 = vpop.f32.mrb[0].mxu0
    %v473 = vadd.f32 0.0, %v472
    %v474 = vpop.f32.mrb[0].mxu0
    %v475 = vpop.f32.mrb[0].mxu0
    %476 = vdwg.mxu0
    %477 = vmatprep.subr.bf16.mxu0 %v311
    %478 = vmatpush1.bf16.msra.mxu0 %v310
    %479 = vmatprep.subr.bf16.mxu0 %v315
    %480 = vmatpush1.bf16.msra.mxu0 %v314
    %481 = vmatprep.subr.bf16.mxu0 %v319
    %482 = vmatpush1.bf16.msra.mxu0 %v318
    %483 = vmatprep.subr.bf16.mxu0 %v323
    %484 = vmatpush1.bf16.msra.mxu0 %v322
    %485 = vmatprep.subr.bf16.mxu0 %v327
    %486 = vmatpush1.bf16.msra.mxu0 %v326
    %487 = vmatprep.subr.bf16.mxu0 %v331
    %488 = vmatpush1.bf16.msra.mxu0 %v330
    %489 = vmatprep.subr.bf16.mxu0 %v335
    %490 = vmatpush1.bf16.msra.mxu0 %v334
    %491 = vmatprep.subr.bf16.mxu0 %v339
    %492 = vmatpush1.bf16.msra.mxu0 %v338
    %493 = vmatprep.subr.bf16.mxu0 %v343
    %494 = vmatpush1.bf16.msra.mxu0 %v342
    %495 = vmatprep.subr.bf16.mxu0 %v347
    %496 = vmatpush1.bf16.msra.mxu0 %v346
    %497 = vmatprep.subr.bf16.mxu0 %v351
    %498 = vmatpush1.bf16.msra.mxu0 %v350
    %499 = vmatprep.subr.bf16.mxu0 %v355
    %500 = vmatpush1.bf16.msra.mxu0 %v354
    %501 = vmatprep.subr.bf16.mxu0 %v359
    %502 = vmatpush1.bf16.msra.mxu0 %v358
    %503 = vmatprep.subr.bf16.mxu0 %v363
    %504 = vmatpush1.bf16.msra.mxu0 %v362
    %505 = vmatprep.subr.bf16.mxu0 %v367
    %506 = vmatpush1.bf16.msra.mxu0 %v366
    %507 = vmatprep.subr.bf16.mxu0 %v371
    %508 = vmatpush1.bf16.msra.mxu0 %v370
    %509 = vmatprep.mubr.bf16.mxu0 %v51
    %510 = vmatmul.mubr.bf16.gmra.mrb[0].mxu0 %v50
    %v511 = vpop.f32.mrb[0].mxu0
    %v512 = vadd.f32 0.0, %v511
    %v513 = vpop.f32.mrb[0].mxu0
    %v514 = vadd.f32 0.0, %v513
    %v515 = vpop.f32.mrb[0].mxu0
    %v516 = vpop.f32.mrb[0].mxu0
    %517 = vdwg.mxu0
    %v518 = vmul.f32 %v471, 0.5
    %v519 = vtanh.pop %v518
    %v520 = vadd.f32 %v519, 1.0
    %v521 = vmul.f32 %v520, 0.5
    %v522 = vmul.f32 %v473, 0.5
    %v523 = vtanh.pop %v522
    %v524 = vadd.f32 %v523, 1.0
    %v525 = vmul.f32 %v524, 0.5
    %v526 = vtanh.pop %v512
    %v527 = vmul.f32 %v514, 0.5
    %v528 = vtanh.pop %v527
    %v529 = vadd.f32 %v528, 1.0
    %v530 = vmul.f32 %v529, 0.5
    %v531 = vld [vmem:[%s2] sm:$0x3]
    %v532 = vmul.f32 %v525, %v531
    %v533 = vmul.f32 %v521, %v526
    %v534 = vadd.f32 %v532, %v533
    %v535 = vtanh.pop %v534
    %v536 = vmul.f32 %v530, %v535
    %537 = vst [vmem:[%s4] sm:$0x3] %v536
    %538 = vst [vmem:[#allocation6] sm:$0x3] %v534
    %539 = vst [vmem:[#allocation2] sm:$0x3] %v536
    %s540 = scalar_lea.vmem %s1, 2
    %v541 = vld [vmem:[%s540] sm:$0x3]
    %542 = vst [vmem:[#allocation2 + $0x2] sm:$0x3] %v541
    %v543 = vld [vmem:[#allocation2] sm:$0xf]
    %v546 = vunpack.c.l.s4 1983009808
    %v547 = vunpack.c.0.s8 %v546
    %v548 = vlaneseq
    %v549 = vshrl.u32 %v548, 7
    %v550 = vsub.s32 %v547, %v549
    %v551 = vrot.slane %v543, %v550
    %v552 = vcombine.high %v551, %v551
    %v555 = vpack.c.bf16 %v551, %v551
    %v556 = vpack.c.bf16 %v552, %v552
    %s557 = scalar_lea.vmem [#allocation3], 512
    %v558 = vld [vmem:[%s557] sm:$0xff]
    %v559 = vld [vmem:[%s557 + $0x8] sm:$0xff]
    %v560 = vld [vmem:[%s557 + $0x10] sm:$0xff]
    %v561 = vld [vmem:[%s557 + $0x18] sm:$0xff]
    %v562 = vld [vmem:[%s557 + $0x20] sm:$0xff]
    %v563 = vld [vmem:[%s557 + $0x28] sm:$0xff]
    %v564 = vld [vmem:[%s557 + $0x30] sm:$0xff]
    %v565 = vld [vmem:[%s557 + $0x38] sm:$0xff]
    %v566 = vld [vmem:[%s557 + $0x40] sm:$0xff]
    %v567 = vld [vmem:[%s557 + $0x48] sm:$0xff]
    %v568 = vld [vmem:[%s557 + $0x50] sm:$0xff]
    %v569 = vld [vmem:[%s557 + $0x58] sm:$0xff]
    %v570 = vld [vmem:[%s557 + $0x60] sm:$0xff]
    %v571 = vld [vmem:[%s557 + $0x68] sm:$0xff]
    %v572 = vld [vmem:[%s557 + $0x70] sm:$0xff]
    %v573 = vld [vmem:[%s557 + $0x78] sm:$0xff]
    %v574 = vld [vmem:[%s557 + $0x80] sm:$0xff]
    %v575 = vld [vmem:[%s557 + $0x88] sm:$0xff]
    %v576 = vld [vmem:[%s557 + $0x90] sm:$0xff]
    %v577 = vld [vmem:[%s557 + $0x98] sm:$0xff]
    %v578 = vld [vmem:[%s557 + $0xa0] sm:$0xff]
    %v579 = vld [vmem:[%s557 + $0xa8] sm:$0xff]
    %v580 = vld [vmem:[%s557 + $0xb0] sm:$0xff]
    %v581 = vld [vmem:[%s557 + $0xb8] sm:$0xff]
    %v582 = vld [vmem:[%s557 + $0xc0] sm:$0xff]
    %v583 = vld [vmem:[%s557 + $0xc8] sm:$0xff]
    %v584 = vld [vmem:[%s557 + $0xd0] sm:$0xff]
    %v585 = vld [vmem:[%s557 + $0xd8] sm:$0xff]
    %v586 = vld [vmem:[%s557 + $0xe0] sm:$0xff]
    %v587 = vld [vmem:[%s557 + $0xe8] sm:$0xff]
    %v588 = vld [vmem:[%s557 + $0xf0] sm:$0xff]
    %v589 = vld [vmem:[%s557 + $0xf8] sm:$0xff]
    %v590 = vld [vmem:[%s557 + $0x100] sm:$0xff]
    %v591 = vld [vmem:[%s557 + $0x108] sm:$0xff]
    %v592 = vld [vmem:[%s557 + $0x110] sm:$0xff]
    %v593 = vld [vmem:[%s557 + $0x118] sm:$0xff]
    %v594 = vld [vmem:[%s557 + $0x120] sm:$0xff]
    %v595 = vld [vmem:[%s557 + $0x128] sm:$0xff]
    %v596 = vld [vmem:[%s557 + $0x130] sm:$0xff]
    %v597 = vld [vmem:[%s557 + $0x138] sm:$0xff]
    %v598 = vld [vmem:[%s557 + $0x140] sm:$0xff]
    %v599 = vld [vmem:[%s557 + $0x148] sm:$0xff]
    %v600 = vld [vmem:[%s557 + $0x150] sm:$0xff]
    %v601 = vld [vmem:[%s557 + $0x158] sm:$0xff]
    %v602 = vld [vmem:[%s557 + $0x160] sm:$0xff]
    %v603 = vld [vmem:[%s557 + $0x168] sm:$0xff]
    %v604 = vld [vmem:[%s557 + $0x170] sm:$0xff]
    %v605 = vld [vmem:[%s557 + $0x178] sm:$0xff]
    %v606 = vld [vmem:[%s557 + $0x180] sm:$0xff]
    %v607 = vld [vmem:[%s557 + $0x188] sm:$0xff]
    %v608 = vld [vmem:[%s557 + $0x190] sm:$0xff]
    %v609 = vld [vmem:[%s557 + $0x198] sm:$0xff]
    %v610 = vld [vmem:[%s557 + $0x1a0] sm:$0xff]
    %v611 = vld [vmem:[%s557 + $0x1a8] sm:$0xff]
    %v612 = vld [vmem:[%s557 + $0x1b0] sm:$0xff]
    %v613 = vld [vmem:[%s557 + $0x1b8] sm:$0xff]
    %v614 = vld [vmem:[%s557 + $0x1c0] sm:$0xff]
    %v615 = vld [vmem:[%s557 + $0x1c8] sm:$0xff]
    %v616 = vld [vmem:[%s557 + $0x1d0] sm:$0xff]
    %v617 = vld [vmem:[%s557 + $0x1d8] sm:$0xff]
    %v618 = vld [vmem:[%s557 + $0x1e0] sm:$0xff]
    %v619 = vld [vmem:[%s557 + $0x1e8] sm:$0xff]
    %v620 = vld [vmem:[%s557 + $0x1f0] sm:$0xff]
    %v621 = vld [vmem:[%s557 + $0x1f8] sm:$0xff]
    %v686 = vunpack.c.l.b16 %v558
    %v687 = vunpack.c.h.b16 %v558
    %v688 = vunpack.c.l.b16 %v559
    %v689 = vunpack.c.h.b16 %v559
    %v690 = vunpack.c.l.b16 %v560
    %v691 = vunpack.c.h.b16 %v560
    %v692 = vunpack.c.l.b16 %v561
    %v693 = vunpack.c.h.b16 %v561
    %v694 = vunpack.c.l.b16 %v562
    %v695 = vunpack.c.h.b16 %v562
    %v696 = vunpack.c.l.b16 %v563
    %v697 = vunpack.c.h.b16 %v563
    %v698 = vunpack.c.l.b16 %v564
    %v699 = vunpack.c.h.b16 %v564
    %v700 = vunpack.c.l.b16 %v565
    %v701 = vunpack.c.h.b16 %v565
    %v702 = vunpack.c.l.b16 %v566
    %v703 = vunpack.c.h.b16 %v566
    %v704 = vunpack.c.l.b16 %v567
    %v705 = vunpack.c.h.b16 %v567
    %v706 = vunpack.c.l.b16 %v568
    %v707 = vunpack.c.h.b16 %v568
    %v708 = vunpack.c.l.b16 %v569
    %v709 = vunpack.c.h.b16 %v569
    %v710 = vunpack.c.l.b16 %v570
    %v711 = vunpack.c.h.b16 %v570
    %v712 = vunpack.c.l.b16 %v571
    %v713 = vunpack.c.h.b16 %v571
    %v714 = vunpack.c.l.b16 %v572
    %v715 = vunpack.c.h.b16 %v572
    %v716 = vunpack.c.l.b16 %v573
    %v717 = vunpack.c.h.b16 %v573
    %v718 = vunpack.c.l.b16 %v574
    %v719 = vunpack.c.h.b16 %v574
    %v720 = vunpack.c.l.b16 %v575
    %v721 = vunpack.c.h.b16 %v575
    %v722 = vunpack.c.l.b16 %v576
    %v723 = vunpack.c.h.b16 %v576
    %v724 = vunpack.c.l.b16 %v577
    %v725 = vunpack.c.h.b16 %v577
    %v726 = vunpack.c.l.b16 %v578
    %v727 = vunpack.c.h.b16 %v578
    %v728 = vunpack.c.l.b16 %v579
    %v729 = vunpack.c.h.b16 %v579
    %v730 = vunpack.c.l.b16 %v580
    %v731 = vunpack.c.h.b16 %v580
    %v732 = vunpack.c.l.b16 %v581
    %v733 = vunpack.c.h.b16 %v581
    %v734 = vunpack.c.l.b16 %v582
    %v735 = vunpack.c.h.b16 %v582
    %v736 = vunpack.c.l.b16 %v583
    %v737 = vunpack.c.h.b16 %v583
    %v738 = vunpack.c.l.b16 %v584
    %v739 = vunpack.c.h.b16 %v584
    %v740 = vunpack.c.l.b16 %v585
    %v741 = vunpack.c.h.b16 %v585
    %v742 = vunpack.c.l.b16 %v586
    %v743 = vunpack.c.h.b16 %v586
    %v744 = vunpack.c.l.b16 %v587
    %v745 = vunpack.c.h.b16 %v587
    %v746 = vunpack.c.l.b16 %v588
    %v747 = vunpack.c.h.b16 %v588
    %v748 = vunpack.c.l.b16 %v589
    %v749 = vunpack.c.h.b16 %v589
    %v750 = vunpack.c.l.b16 %v590
    %v751 = vunpack.c.h.b16 %v590
    %v752 = vunpack.c.l.b16 %v591
    %v753 = vunpack.c.h.b16 %v591
    %v754 = vunpack.c.l.b16 %v592
    %v755 = vunpack.c.h.b16 %v592
    %v756 = vunpack.c.l.b16 %v593
    %v757 = vunpack.c.h.b16 %v593
    %v758 = vunpack.c.l.b16 %v594
    %v759 = vunpack.c.h.b16 %v594
    %v760 = vunpack.c.l.b16 %v595
    %v761 = vunpack.c.h.b16 %v595
    %v762 = vunpack.c.l.b16 %v596
    %v763 = vunpack.c.h.b16 %v596
    %v764 = vunpack.c.l.b16 %v597
    %v765 = vunpack.c.h.b16 %v597
    %v766 = vunpack.c.l.b16 %v598
    %v767 = vunpack.c.h.b16 %v598
    %v768 = vunpack.c.l.b16 %v599
    %v769 = vunpack.c.h.b16 %v599
    %v770 = vunpack.c.l.b16 %v600
    %v771 = vunpack.c.h.b16 %v600
    %v772 = vunpack.c.l.b16 %v601
    %v773 = vunpack.c.h.b16 %v601
    %v774 = vunpack.c.l.b16 %v602
    %v775 = vunpack.c.h.b16 %v602
    %v776 = vunpack.c.l.b16 %v603
    %v777 = vunpack.c.h.b16 %v603
    %v778 = vunpack.c.l.b16 %v604
    %v779 = vunpack.c.h.b16 %v604
    %v780 = vunpack.c.l.b16 %v605
    %v781 = vunpack.c.h.b16 %v605
    %v782 = vunpack.c.l.b16 %v606
    %v783 = vunpack.c.h.b16 %v606
    %v784 = vunpack.c.l.b16 %v607
    %v785 = vunpack.c.h.b16 %v607
    %v786 = vunpack.c.l.b16 %v608
    %v787 = vunpack.c.h.b16 %v608
    %v788 = vunpack.c.l.b16 %v609
    %v789 = vunpack.c.h.b16 %v609
    %v790 = vunpack.c.l.b16 %v610
    %v791 = vunpack.c.h.b16 %v610
    %v792 = vunpack.c.l.b16 %v611
    %v793 = vunpack.c.h.b16 %v611
    %v794 = vunpack.c.l.b16 %v612
    %v795 = vunpack.c.h.b16 %v612
    %v796 = vunpack.c.l.b16 %v613
    %v797 = vunpack.c.h.b16 %v613
    %v798 = vunpack.c.l.b16 %v614
    %v799 = vunpack.c.h.b16 %v614
    %v800 = vunpack.c.l.b16 %v615
    %v801 = vunpack.c.h.b16 %v615
    %v802 = vunpack.c.l.b16 %v616
    %v803 = vunpack.c.h.b16 %v616
    %v804 = vunpack.c.l.b16 %v617
    %v805 = vunpack.c.h.b16 %v617
    %v806 = vunpack.c.l.b16 %v618
    %v807 = vunpack.c.h.b16 %v618
    %v808 = vunpack.c.l.b16 %v619
    %v809 = vunpack.c.h.b16 %v619
    %v810 = vunpack.c.l.b16 %v620
    %v811 = vunpack.c.h.b16 %v620
    %v812 = vunpack.c.l.b16 %v621
    %v813 = vunpack.c.h.b16 %v621
    %v814 = vpack.c.b16 %v690, %v686
    %v815 = vpack.c.b16 %v691, %v687
    %v816 = vpack.c.b16 %v692, %v688
    %v817 = vpack.c.b16 %v693, %v689
    %v818 = vpack.c.b16 %v698, %v694
    %v819 = vpack.c.b16 %v699, %v695
    %v820 = vpack.c.b16 %v700, %v696
    %v821 = vpack.c.b16 %v701, %v697
    %v822 = vpack.c.b16 %v706, %v702
    %v823 = vpack.c.b16 %v707, %v703
    %v824 = vpack.c.b16 %v708, %v704
    %v825 = vpack.c.b16 %v709, %v705
    %v826 = vpack.c.b16 %v714, %v710
    %v827 = vpack.c.b16 %v715, %v711
    %v828 = vpack.c.b16 %v716, %v712
    %v829 = vpack.c.b16 %v717, %v713
    %v830 = vpack.c.b16 %v722, %v718
    %v831 = vpack.c.b16 %v723, %v719
    %v832 = vpack.c.b16 %v724, %v720
    %v833 = vpack.c.b16 %v725, %v721
    %v834 = vpack.c.b16 %v730, %v726
    %v835 = vpack.c.b16 %v731, %v727
    %v836 = vpack.c.b16 %v732, %v728
    %v837 = vpack.c.b16 %v733, %v729
    %v838 = vpack.c.b16 %v738, %v734
    %v839 = vpack.c.b16 %v739, %v735
    %v840 = vpack.c.b16 %v740, %v736
    %v841 = vpack.c.b16 %v741, %v737
    %v842 = vpack.c.b16 %v746, %v742
    %v843 = vpack.c.b16 %v747, %v743
    %v844 = vpack.c.b16 %v748, %v744
    %v845 = vpack.c.b16 %v749, %v745
    %v846 = vpack.c.b16 %v754, %v750
    %v847 = vpack.c.b16 %v755, %v751
    %v848 = vpack.c.b16 %v756, %v752
    %v849 = vpack.c.b16 %v757, %v753
    %v850 = vpack.c.b16 %v762, %v758
    %v851 = vpack.c.b16 %v763, %v759
    %v852 = vpack.c.b16 %v764, %v760
    %v853 = vpack.c.b16 %v765, %v761
    %v854 = vpack.c.b16 %v770, %v766
    %v855 = vpack.c.b16 %v771, %v767
    %v856 = vpack.c.b16 %v772, %v768
    %v857 = vpack.c.b16 %v773, %v769
    %v858 = vpack.c.b16 %v778, %v774
    %v859 = vpack.c.b16 %v779, %v775
    %v860 = vpack.c.b16 %v780, %v776
    %v861 = vpack.c.b16 %v781, %v777
    %v862 = vpack.c.b16 %v786, %v782
    %v863 = vpack.c.b16 %v787, %v783
    %v864 = vpack.c.b16 %v788, %v784
    %v865 = vpack.c.b16 %v789, %v785
    %v866 = vpack.c.b16 %v794, %v790
    %v867 = vpack.c.b16 %v795, %v791
    %v868 = vpack.c.b16 %v796, %v792
    %v869 = vpack.c.b16 %v797, %v793
    %v870 = vpack.c.b16 %v802, %v798
    %v871 = vpack.c.b16 %v803, %v799
    %v872 = vpack.c.b16 %v804, %v800
    %v873 = vpack.c.b16 %v805, %v801
    %v874 = vpack.c.b16 %v810, %v806
    %v875 = vpack.c.b16 %v811, %v807
    %v876 = vpack.c.b16 %v812, %v808
    %v877 = vpack.c.b16 %v813, %v809
    %942 = vmatprep.subr.bf16.mxu0 %v815
    %943 = vmatpush1.bf16.msra.mxu0 %v814
    %944 = vmatprep.subr.bf16.mxu0 %v819
    %945 = vmatpush1.bf16.msra.mxu0 %v818
    %946 = vmatprep.subr.bf16.mxu0 %v823
    %947 = vmatpush1.bf16.msra.mxu0 %v822
    %948 = vmatprep.subr.bf16.mxu0 %v827
    %949 = vmatpush1.bf16.msra.mxu0 %v826
    %950 = vmatprep.subr.bf16.mxu0 %v831
    %951 = vmatpush1.bf16.msra.mxu0 %v830
    %952 = vmatprep.subr.bf16.mxu0 %v835
    %953 = vmatpush1.bf16.msra.mxu0 %v834
    %954 = vmatprep.subr.bf16.mxu0 %v839
    %955 = vmatpush1.bf16.msra.mxu0 %v838
    %956 = vmatprep.subr.bf16.mxu0 %v843
    %957 = vmatpush1.bf16.msra.mxu0 %v842
    %958 = vmatprep.subr.bf16.mxu0 %v847
    %959 = vmatpush1.bf16.msra.mxu0 %v846
    %960 = vmatprep.subr.bf16.mxu0 %v851
    %961 = vmatpush1.bf16.msra.mxu0 %v850
    %962 = vmatprep.subr.bf16.mxu0 %v855
    %963 = vmatpush1.bf16.msra.mxu0 %v854
    %964 = vmatprep.subr.bf16.mxu0 %v859
    %965 = vmatpush1.bf16.msra.mxu0 %v858
    %966 = vmatprep.subr.bf16.mxu0 %v863
    %967 = vmatpush1.bf16.msra.mxu0 %v862
    %968 = vmatprep.subr.bf16.mxu0 %v867
    %969 = vmatpush1.bf16.msra.mxu0 %v866
    %970 = vmatprep.subr.bf16.mxu0 %v871
    %971 = vmatpush1.bf16.msra.mxu0 %v870
    %972 = vmatprep.subr.bf16.mxu0 %v875
    %973 = vmatpush1.bf16.msra.mxu0 %v874
    %974 = vmatprep.mubr.bf16.mxu0 %v556
    %975 = vmatmul.mubr.bf16.gmra.mrb[0].mxu0 %v555
    %v976 = vpop.f32.mrb[0].mxu0
    %v977 = vadd.f32 0.0, %v976
    %v978 = vpop.f32.mrb[0].mxu0
    %v979 = vadd.f32 0.0, %v978
    %v980 = vpop.f32.mrb[0].mxu0
    %v981 = vpop.f32.mrb[0].mxu0
    %982 = vdwg.mxu0
    %983 = vmatprep.subr.bf16.mxu0 %v817
    %984 = vmatpush1.bf16.msra.mxu0 %v816
    %985 = vmatprep.subr.bf16.mxu0 %v821
    %986 = vmatpush1.bf16.msra.mxu0 %v820
    %987 = vmatprep.subr.bf16.mxu0 %v825
    %988 = vmatpush1.bf16.msra.mxu0 %v824
    %989 = vmatprep.subr.bf16.mxu0 %v829
    %990 = vmatpush1.bf16.msra.mxu0 %v828
    %991 = vmatprep.subr.bf16.mxu0 %v833
    %992 = vmatpush1.bf16.msra.mxu0 %v832
    %993 = vmatprep.subr.bf16.mxu0 %v837
    %994 = vmatpush1.bf16.msra.mxu0 %v836
    %995 = vmatprep.subr.bf16.mxu0 %v841
    %996 = vmatpush1.bf16.msra.mxu0 %v840
    %997 = vmatprep.subr.bf16.mxu0 %v845
    %998 = vmatpush1.bf16.msra.mxu0 %v844
    %999 = vmatprep.subr.bf16.mxu0 %v849
    %1000 = vmatpush1.bf16.msra.mxu0 %v848
    %1001 = vmatprep.subr.bf16.mxu0 %v853
    %1002 = vmatpush1.bf16.msra.mxu0 %v852
    %1003 = vmatprep.subr.bf16.mxu0 %v857
    %1004 = vmatpush1.bf16.msra.mxu0 %v856
    %1005 = vmatprep.subr.bf16.mxu0 %v861
    %1006 = vmatpush1.bf16.msra.mxu0 %v860
    %1007 = vmatprep.subr.bf16.mxu0 %v865
    %1008 = vmatpush1.bf16.msra.mxu0 %v864
    %1009 = vmatprep.subr.bf16.mxu0 %v869
    %1010 = vmatpush1.bf16.msra.mxu0 %v868
    %1011 = vmatprep.subr.bf16.mxu0 %v873
    %1012 = vmatpush1.bf16.msra.mxu0 %v872
    %1013 = vmatprep.subr.bf16.mxu0 %v877
    %1014 = vmatpush1.bf16.msra.mxu0 %v876
    %1015 = vmatprep.mubr.bf16.mxu0 %v556
    %1016 = vmatmul.mubr.bf16.gmra.mrb[0].mxu0 %v555
    %v1017 = vpop.f32.mrb[0].mxu0
    %v1018 = vadd.f32 0.0, %v1017
    %v1019 = vpop.f32.mrb[0].mxu0
    %v1020 = vadd.f32 0.0, %v1019
    %v1021 = vpop.f32.mrb[0].mxu0
    %v1022 = vpop.f32.mrb[0].mxu0
    %1023 = vdwg.mxu0
    %v1024 = vmul.f32 %v977, 0.5
    %v1025 = vtanh.pop %v1024
    %v1026 = vadd.f32 %v1025, 1.0
    %v1027 = vmul.f32 %v1026, 0.5
    %v1028 = vmul.f32 %v979, 0.5
    %v1029 = vtanh.pop %v1028
    %v1030 = vadd.f32 %v1029, 1.0
    %v1031 = vmul.f32 %v1030, 0.5
    %v1032 = vtanh.pop %v1018
    %v1033 = vmul.f32 %v1020, 0.5
    %v1034 = vtanh.pop %v1033
    %v1035 = vadd.f32 %v1034, 1.0
    %v1036 = vmul.f32 %v1035, 0.5
    %s1037 = scalar_lea.vmem %s2, 2
    %v1038 = vld [vmem:[%s1037] sm:$0x3]
    %v1039 = vmul.f32 %v1031, %v1038
    %v1040 = vmul.f32 %v1027, %v1032
    %v1041 = vadd.f32 %v1039, %v1040
    %v1042 = vtanh.pop %v1041
    %v1043 = vmul.f32 %v1036, %v1042
    %s1044 = scalar_lea.vmem %s4, 2
    %1045 = vst [vmem:[%s1044] sm:$0x3] %v1043
    %s1046 = scalar_lea.vmem [#allocation6], 2
    %1047 = vst [vmem:[%s1046] sm:$0x3] %v1041
    // Predicated region
    $region22: #{lstm_stack_step.1} parent=1 // pred_check
      _
    $region23: #{lstm_stack_step.1} parent=1 // pred_check_branch
      %1049 = sbr.rel (0) target = $region25
    $region24: #{lstm_stack_step.1} parent=1 // pred_region
      _
    $region25: #{lstm_stack_step.1} parent=1 // pred_fallthru
      _
    // Predicated region
    $region26: #{lstm_stack_step.1} parent=1 // pred_check
      _
    $region27: #{lstm_stack_step.1} parent=1 // pred_check_branch
      %1051 = sbr.rel (0) target = $region29
    $region28: #{lstm_stack_step.1} parent=1 // pred_region
      %s1053 = ssub.s32 64, 64
      %1054 = vsyncadd [#allocation5], %s1053
      %s1055 = sshll.u32 [#allocation6], 4
      %s1056 = int_to_ptr.vmem [resolvable:$true] %s1055
      %1061 = dma.vmem_to_hbm [thread:$0]  %s1056, 64, %s5, [#allocation5], 32, 32, 2
    $region29: #{lstm_stack_step.1} parent=1 // pred_fallthru
      _
    // Predicated region
    $region30: #{lstm_stack_step.1} parent=1 // pred_check
      _
    $region31: #{lstm_stack_step.1} parent=1 // pred_check_branch
      %1063 = sbr.rel (0) target = $region33
    $region32: #{lstm_stack_step.1} parent=1 // pred_region
      _
    $region33: #{lstm_stack_step.1} parent=1 // pred_fallthru
      _
    // Predicated region
    $region34: #{lstm_stack_step.1} parent=1 // pred_check
      _
    $region35: #{lstm_stack_step.1} parent=1 // pred_check_branch
      %1065 = sbr.rel (0) target = $region37
    $region36: #{lstm_stack_step.1} parent=1 // pred_region
      %1066 = dma.done [#allocation5], 64
    $region37: #{lstm_stack_step.1} parent=1 // pred_fallthru
      _
    %1067 = vsyncpa [#allocation4], 1
    %1068 = vsyncpa [#allocation5], 1

</llo_original>
